<compile_context>
chip_gen: v7x
topology: tpu7x:2x2x1
jax: 0.10.0
libtpu: 0.0.40
codegen_flags: <defaults>
</compile_context>

<pallas_src>
import functools

import jax
import jax.numpy as jnp
from jax.experimental import pallas as pl
from jax.experimental.pallas import tpu as pltpu


_UNROLL_C = 64                  # fully unroll the channel loop up to this C
_VMEM_BUDGET_BYTES = 8 << 20    # target double-buffered block footprint


def _conv1x1_kernel(w_ref, b_ref, x_ref, o_ref, *, apply_sigmoid):
    """1x1 conv (C -> 1) + bias [+ sigmoid] on one (nb, C, s, L) block.

    w_ref: (C,)            SMEM f32 conv weight
    b_ref: (1,)            SMEM f32 conv bias
    x_ref: (nb, C, s, L)   VMEM input block (L lane-dense)
    o_ref: (nb, 1, s, L)   VMEM output block
    """
    nb = x_ref.shape[0]
    c = x_ref.shape[1]
    for b in range(nb):                       # nb is small & static
        xb = x_ref.at[b]                      # Ref view (C, s, L); no load yet
        acc = xb[0].astype(jnp.float32) * w_ref[0]
        if c <= _UNROLL_C:
            for ci in range(1, c):
                acc = acc + xb[ci].astype(jnp.float32) * w_ref[ci]
        else:
            # TODO(synk): for very large C, contract on the (idle) MXU instead.
            def body(ci, a):
                return a + xb[ci].astype(jnp.float32) * w_ref[ci]
            acc = jax.lax.fori_loop(1, c, body, acc)
        acc = acc + b_ref[0]
        if apply_sigmoid:
            acc = jax.nn.sigmoid(acc)
        o_ref[b, 0] = acc.astype(o_ref.dtype)


def _select_block(n, c, s_dim, last_dim, elem_bytes):
    """Pick (nb, s_blk) so the double-buffered block footprint fits the budget."""
    # total footprint ~= 2 (dbl-buf) * nb * (c input + 1 output) * s_blk * L * bytes
    max_elems = max(last_dim, _VMEM_BUDGET_BYTES // (2 * (c + 1) * elem_bytes))

    s_cap = max(1, max_elems // last_dim)
    if s_dim <= s_cap:
        s_blk = s_dim
    else:
        s_blk = 0
        t = (s_cap // 8) * 8
        while t >= 8:
            if s_dim % t == 0:          # multiple of 8 that divides s_dim
                s_blk = t
                break
            t -= 8
        if s_blk == 0:
            # TODO(synk): no 8-multiple divisor under budget; use one full block.
            s_blk = s_dim

    nb_cap = max(1, max_elems // (s_blk * last_dim))
    nb = max(1, min(n, nb_cap))
    while n % nb != 0:
        nb -= 1
    return nb, s_blk


def _conv1x1(x, w, b, apply_sigmoid):
    """x: (N, C, H, W). Returns (N, 1, H, W) = [sigmoid](w . x + b)."""
    n, c, h, w_sp = x.shape
    hw = h * w_sp

    if hw % 128 == 0:
        s_dim, last_dim = hw // 128, 128          # lane-dense layout
        x4 = x.reshape(n, c, s_dim, last_dim)     # free (contiguous) reshape
    else:
        # TODO(synk): non-128-divisible H*W keeps the original (partially
        # masked) W-in-lanes layout; still correct, just less lane-dense.
        s_dim, last_dim = h, w_sp
        x4 = x

    nb, s_blk = _select_block(n, c, s_dim, last_dim,
                              jnp.dtype(x.dtype).itemsize)

    kernel = functools.partial(_conv1x1_kernel, apply_sigmoid=apply_sigmoid)
    out = pl.pallas_call(
        kernel,
        out_shape=jax.ShapeDtypeStruct((n, 1, s_dim, last_dim), x.dtype),
        grid_spec=pltpu.PrefetchScalarGridSpec(
            num_scalar_prefetch=0,
            grid=(n // nb, s_dim // s_blk),
            in_specs=[
                pl.BlockSpec(memory_space=pltpu.MemorySpace.SMEM),    # weight
                pl.BlockSpec(memory_space=pltpu.MemorySpace.SMEM),    # bias
                pl.BlockSpec((nb, c, s_blk, last_dim),
                             lambda i, j: (i, 0, j, 0)),
            ],
            out_specs=pl.BlockSpec((nb, 1, s_blk, last_dim),
                                   lambda i, j: (i, 0, j, 0)),
        ),
        compiler_params=pltpu.CompilerParams(
            dimension_semantics=("parallel", "parallel"),
            vmem_limit_bytes=32 << 20),
    )(w, b, x4)
    return out.reshape(n, 1, h, w_sp)


def _bilinear_upsample_align_corners(x, scale_factor):
    """NCHW bilinear upsample, align_corners=True (matches nn.Upsample). f32 out."""
    n, c, h, w = x.shape
    oh, ow = h * scale_factor, w * scale_factor

    def src_coords(out_size, in_size):
        if out_size == 1 or in_size == 1:
            return jnp.zeros((out_size,), jnp.float32)
        return jnp.arange(out_size, dtype=jnp.float32) * (in_size - 1) / (out_size - 1)

    ys = src_coords(oh, h)
    xs = src_coords(ow, w)
    y0 = jnp.clip(jnp.floor(ys).astype(jnp.int32), 0, h - 1)
    y1 = jnp.clip(y0 + 1, 0, h - 1)
    x0 = jnp.clip(jnp.floor(xs).astype(jnp.int32), 0, w - 1)
    x1 = jnp.clip(x0 + 1, 0, w - 1)
    wy = (ys - y0.astype(jnp.float32))[None, None, :, None]
    wx = (xs - x0.astype(jnp.float32))[None, None, None, :]

    xf = x.astype(jnp.float32)
    g = lambda yi, xi: xf[:, :, yi, :][:, :, :, xi]
    top = g(y0, x0) * (1.0 - wx) + g(y0, x1) * wx
    bot = g(y1, x0) * (1.0 - wx) + g(y1, x1) * wx
    return top * (1.0 - wy) + bot * wy


@functools.partial(jax.jit, static_argnames=("scale_factor",))
def ph_block_forward(x, weight, bias, scale_factor=1):
    """x: (N, C, H, W); weight: (1, C, 1, 1); bias: (1,). Returns (N, 1, H', W')."""
    n, c, h, w = x.shape
    w_flat = weight.reshape(c).astype(jnp.float32)
    b_flat = bias.reshape(1).astype(jnp.float32)

    # 1x1 conv (+ bias) at the ORIGINAL resolution.  The conv and the bilinear
    # upsample are both linear (and bilinear weights sum to 1, so bias passes
    # through), hence this order is mathematically identical to PyTorch's
    # upsample -> conv -> sigmoid.  Sigmoid stays last.
    conv = _conv1x1(x, w_flat, b_flat, apply_sigmoid=(scale_factor <= 1))

    if scale_factor > 1:
        # TODO(synk): single-channel upsample + sigmoid epilogue is plain JAX
        # (C*s^2 less data than the original order); could be fused into a
        # row-pair-lerp Pallas kernel for a further win.
        up = _bilinear_upsample_align_corners(conv, scale_factor)
        conv = jax.nn.sigmoid(up).astype(x.dtype)
    return conv


if __name__ == "__main__":
    key = jax.random.PRNGKey(0)
    kx, kw, kb = jax.random.split(key, 3)

    N, C, H, W = 2, 4, 16, 16
    x = jax.random.normal(kx, (N, C, H, W), dtype=jnp.float32)

    # Deterministic param init (mimics PyTorch Conv2d uniform(-1/sqrt(C), 1/sqrt(C))).
    bound = 1.0 / jnp.sqrt(jnp.float32(C))
    weight = jax.random.uniform(kw, (1, C, 1, 1), jnp.float32, -bound, bound)
    bias = jax.random.uniform(kb, (1,), jnp.float32, -bound, bound)

    # scale_factor == 1 path.
    out1 = jax.block_until_ready(ph_block_forward(x, weight, bias, scale_factor=1))
    ref1 = jax.nn.sigmoid(
        jnp.einsum("nchw,c->nhw", x, weight.reshape(C)) + bias[0])[:, None]
    assert out1.shape == (N, 1, H, W)
    assert jnp.allclose(out1, ref1, atol=1e-5), "scale=1 mismatch vs reference"

    # scale_factor == 2 path; reference uses the original PyTorch order
    # (upsample -> conv -> sigmoid) to validate the commute.
    out2 = jax.block_until_ready(ph_block_forward(x, weight, bias, scale_factor=2))
    x_up = _bilinear_upsample_align_corners(x, 2)
    ref2 = jax.nn.sigmoid(
        jnp.einsum("nchw,c->nhw", x_up, weight.reshape(C)) + bias[0])[:, None]
    assert out2.shape == (N, 1, 2 * H, 2 * W)
    assert jnp.allclose(out2, ref2, atol=1e-5), "scale=2 mismatch vs reference"

    print("KERNEL_OK")
</pallas_src>

<mosaic_0001>
module attributes {stable_mosaic.version = 11 : i64} {
  func.func @_conv1x1_kernel(%arg0: i32, %arg1: i32, %arg2: memref<4xf32, #tpu.memory_space<smem>>, %arg3: memref<1xf32, #tpu.memory_space<smem>>, %arg4: memref<2x4x2x128xf32, #tpu.memory_space<vmem>>, %arg5: memref<2x1x2x128xf32, #tpu.memory_space<vmem>>) attributes {dimension_semantics = [#tpu.dimension_semantics<parallel>, #tpu.dimension_semantics<parallel>], iteration_bounds = array<i64: 1, 1>, scalar_prefetch = 0 : i64, scratch_operands = 0 : i64, tpu.core_type = #tpu.core_type<tc>, window_params = [{transform_indices = @transform_0, window_bounds = array<i64: 4>}, {transform_indices = @transform_1, window_bounds = array<i64: 1>}, {transform_indices = @transform_2, window_bounds = array<i64: 2, 4, 2, 128>}, {transform_indices = @transform_3, window_bounds = array<i64: 2, 1, 2, 128>}]} {
    %c0_i32 = arith.constant 0 : i32
    %c0_i32_0 = arith.constant 0 : i32
    %c0_i32_1 = arith.constant 0 : i32
    %c0_i32_2 = arith.constant 0 : i32
    %0 = tpu.memref_slice %arg4[%c0_i32, %c0_i32_0, %c0_i32_1, %c0_i32_2] : memref<2x4x2x128xf32, #tpu.memory_space<vmem>> -> memref<1x4x2x128xf32, #tpu.memory_space<vmem>>
    %1 = tpu.memref_squeeze %0 : memref<1x4x2x128xf32, #tpu.memory_space<vmem>> -> memref<4x2x128xf32, #tpu.memory_space<vmem>>
    %c0 = arith.constant 0 : index
    %c0_3 = arith.constant 0 : index
    %c0_4 = arith.constant 0 : index
    %2 = vector.load %1[%c0, %c0_3, %c0_4] : memref<4x2x128xf32, #tpu.memory_space<vmem>>, vector<1x2x128xf32>
    %3 = vector.shape_cast %2 : vector<1x2x128xf32> to vector<2x128xf32>
    %c0_5 = arith.constant 0 : index
    %4 = memref.load %arg2[%c0_5] : memref<4xf32, #tpu.memory_space<smem>>
    %5 = vector.broadcast %4 : f32 to vector<2x128xf32>
    %6 = arith.mulf %3, %5 : vector<2x128xf32>
    %c0_i32_6 = arith.constant 0 : i32
    %c0_i32_7 = arith.constant 0 : i32
    %c0_i32_8 = arith.constant 0 : i32
    %c0_i32_9 = arith.constant 0 : i32
    %7 = tpu.memref_slice %arg4[%c0_i32_6, %c0_i32_7, %c0_i32_8, %c0_i32_9] : memref<2x4x2x128xf32, #tpu.memory_space<vmem>> -> memref<1x4x2x128xf32, #tpu.memory_space<vmem>>
    %8 = tpu.memref_squeeze %7 : memref<1x4x2x128xf32, #tpu.memory_space<vmem>> -> memref<4x2x128xf32, #tpu.memory_space<vmem>>
    %c1 = arith.constant 1 : index
    %c0_10 = arith.constant 0 : index
    %c0_11 = arith.constant 0 : index
    %9 = vector.load %8[%c1, %c0_10, %c0_11] : memref<4x2x128xf32, #tpu.memory_space<vmem>>, vector<1x2x128xf32>
    %10 = vector.shape_cast %9 : vector<1x2x128xf32> to vector<2x128xf32>
    %c1_12 = arith.constant 1 : index
    %11 = memref.load %arg2[%c1_12] : memref<4xf32, #tpu.memory_space<smem>>
    %12 = vector.broadcast %11 : f32 to vector<2x128xf32>
    %13 = arith.mulf %10, %12 : vector<2x128xf32>
    %14 = arith.addf %6, %13 : vector<2x128xf32>
    %c0_i32_13 = arith.constant 0 : i32
    %c0_i32_14 = arith.constant 0 : i32
    %c0_i32_15 = arith.constant 0 : i32
    %c0_i32_16 = arith.constant 0 : i32
    %15 = tpu.memref_slice %arg4[%c0_i32_13, %c0_i32_14, %c0_i32_15, %c0_i32_16] : memref<2x4x2x128xf32, #tpu.memory_space<vmem>> -> memref<1x4x2x128xf32, #tpu.memory_space<vmem>>
    %16 = tpu.memref_squeeze %15 : memref<1x4x2x128xf32, #tpu.memory_space<vmem>> -> memref<4x2x128xf32, #tpu.memory_space<vmem>>
    %c2 = arith.constant 2 : index
    %c0_17 = arith.constant 0 : index
    %c0_18 = arith.constant 0 : index
    %17 = vector.load %16[%c2, %c0_17, %c0_18] : memref<4x2x128xf32, #tpu.memory_space<vmem>>, vector<1x2x128xf32>
    %18 = vector.shape_cast %17 : vector<1x2x128xf32> to vector<2x128xf32>
    %c2_19 = arith.constant 2 : index
    %19 = memref.load %arg2[%c2_19] : memref<4xf32, #tpu.memory_space<smem>>
    %20 = vector.broadcast %19 : f32 to vector<2x128xf32>
    %21 = arith.mulf %18, %20 : vector<2x128xf32>
    %22 = arith.addf %14, %21 : vector<2x128xf32>
    %c0_i32_20 = arith.constant 0 : i32
    %c0_i32_21 = arith.constant 0 : i32
    %c0_i32_22 = arith.constant 0 : i32
    %c0_i32_23 = arith.constant 0 : i32
    %23 = tpu.memref_slice %arg4[%c0_i32_20, %c0_i32_21, %c0_i32_22, %c0_i32_23] : memref<2x4x2x128xf32, #tpu.memory_space<vmem>> -> memref<1x4x2x128xf32, #tpu.memory_space<vmem>>
    %24 = tpu.memref_squeeze %23 : memref<1x4x2x128xf32, #tpu.memory_space<vmem>> -> memref<4x2x128xf32, #tpu.memory_space<vmem>>
    %c3 = arith.constant 3 : index
    %c0_24 = arith.constant 0 : index
    %c0_25 = arith.constant 0 : index
    %25 = vector.load %24[%c3, %c0_24, %c0_25] : memref<4x2x128xf32, #tpu.memory_space<vmem>>, vector<1x2x128xf32>
    %26 = vector.shape_cast %25 : vector<1x2x128xf32> to vector<2x128xf32>
    %c3_26 = arith.constant 3 : index
    %27 = memref.load %arg2[%c3_26] : memref<4xf32, #tpu.memory_space<smem>>
    %28 = vector.broadcast %27 : f32 to vector<2x128xf32>
    %29 = arith.mulf %26, %28 : vector<2x128xf32>
    %30 = arith.addf %22, %29 : vector<2x128xf32>
    %c0_27 = arith.constant 0 : index
    %31 = memref.load %arg3[%c0_27] : memref<1xf32, #tpu.memory_space<smem>>
    %32 = vector.broadcast %31 : f32 to vector<2x128xf32>
    %33 = arith.addf %30, %32 : vector<2x128xf32>
    %34 = arith.negf %33 : vector<2x128xf32>
    %35 = math.exp %34 : vector<2x128xf32>
    %cst = arith.constant 1.000000e+00 : f32
    %36 = vector.broadcast %cst : f32 to vector<2x128xf32>
    %37 = arith.addf %36, %35 : vector<2x128xf32>
    %38 = arith.divf %36, %37 : vector<2x128xf32>
    %c0_28 = arith.constant 0 : index
    %c0_29 = arith.constant 0 : index
    %c0_30 = arith.constant 0 : index
    %c0_31 = arith.constant 0 : index
    %39 = vector.load %arg5[%c0_28, %c0_29, %c0_30, %c0_31] : memref<2x1x2x128xf32, #tpu.memory_space<vmem>>, vector<1x1x2x128xf32>
    %40 = vector.shape_cast %39 : vector<1x1x2x128xf32> to vector<2x128xf32>
    %41 = vector.shape_cast %38 : vector<2x128xf32> to vector<1x1x2x128xf32>
    tpu.vector_store %arg5[%c0_28, %c0_29, %c0_30, %c0_31], %41 {strides = array<i32>} : memref<2x1x2x128xf32, #tpu.memory_space<vmem>>, vector<1x1x2x128xf32>,
    %c1_i32 = arith.constant 1 : i32
    %c0_i32_32 = arith.constant 0 : i32
    %c0_i32_33 = arith.constant 0 : i32
    %c0_i32_34 = arith.constant 0 : i32
    %42 = tpu.memref_slice %arg4[%c1_i32, %c0_i32_32, %c0_i32_33, %c0_i32_34] : memref<2x4x2x128xf32, #tpu.memory_space<vmem>> -> memref<1x4x2x128xf32, #tpu.memory_space<vmem>>
    %43 = tpu.memref_squeeze %42 : memref<1x4x2x128xf32, #tpu.memory_space<vmem>> -> memref<4x2x128xf32, #tpu.memory_space<vmem>>
    %c0_35 = arith.constant 0 : index
    %c0_36 = arith.constant 0 : index
    %c0_37 = arith.constant 0 : index
    %44 = vector.load %43[%c0_35, %c0_36, %c0_37] : memref<4x2x128xf32, #tpu.memory_space<vmem>>, vector<1x2x128xf32>
    %45 = vector.shape_cast %44 : vector<1x2x128xf32> to vector<2x128xf32>
    %c0_38 = arith.constant 0 : index
    %46 = memref.load %arg2[%c0_38] : memref<4xf32, #tpu.memory_space<smem>>
    %47 = vector.broadcast %46 : f32 to vector<2x128xf32>
    %48 = arith.mulf %45, %47 : vector<2x128xf32>
    %c1_i32_39 = arith.constant 1 : i32
    %c0_i32_40 = arith.constant 0 : i32
    %c0_i32_41 = arith.constant 0 : i32
    %c0_i32_42 = arith.constant 0 : i32
    %49 = tpu.memref_slice %arg4[%c1_i32_39, %c0_i32_40, %c0_i32_41, %c0_i32_42] : memref<2x4x2x128xf32, #tpu.memory_space<vmem>> -> memref<1x4x2x128xf32, #tpu.memory_space<vmem>>
    %50 = tpu.memref_squeeze %49 : memref<1x4x2x128xf32, #tpu.memory_space<vmem>> -> memref<4x2x128xf32, #tpu.memory_space<vmem>>
    %c1_43 = arith.constant 1 : index
    %c0_44 = arith.constant 0 : index
    %c0_45 = arith.constant 0 : index
    %51 = vector.load %50[%c1_43, %c0_44, %c0_45] : memref<4x2x128xf32, #tpu.memory_space<vmem>>, vector<1x2x128xf32>
    %52 = vector.shape_cast %51 : vector<1x2x128xf32> to vector<2x128xf32>
    %c1_46 = arith.constant 1 : index
    %53 = memref.load %arg2[%c1_46] : memref<4xf32, #tpu.memory_space<smem>>
    %54 = vector.broadcast %53 : f32 to vector<2x128xf32>
    %55 = arith.mulf %52, %54 : vector<2x128xf32>
    %56 = arith.addf %48, %55 : vector<2x128xf32>
    %c1_i32_47 = arith.constant 1 : i32
    %c0_i32_48 = arith.constant 0 : i32
    %c0_i32_49 = arith.constant 0 : i32
    %c0_i32_50 = arith.constant 0 : i32
    %57 = tpu.memref_slice %arg4[%c1_i32_47, %c0_i32_48, %c0_i32_49, %c0_i32_50] : memref<2x4x2x128xf32, #tpu.memory_space<vmem>> -> memref<1x4x2x128xf32, #tpu.memory_space<vmem>>
    %58 = tpu.memref_squeeze %57 : memref<1x4x2x128xf32, #tpu.memory_space<vmem>> -> memref<4x2x128xf32, #tpu.memory_space<vmem>>
    %c2_51 = arith.constant 2 : index
    %c0_52 = arith.constant 0 : index
    %c0_53 = arith.constant 0 : index
    %59 = vector.load %58[%c2_51, %c0_52, %c0_53] : memref<4x2x128xf32, #tpu.memory_space<vmem>>, vector<1x2x128xf32>
    %60 = vector.shape_cast %59 : vector<1x2x128xf32> to vector<2x128xf32>
    %c2_54 = arith.constant 2 : index
    %61 = memref.load %arg2[%c2_54] : memref<4xf32, #tpu.memory_space<smem>>
    %62 = vector.broadcast %61 : f32 to vector<2x128xf32>
    %63 = arith.mulf %60, %62 : vector<2x128xf32>
    %64 = arith.addf %56, %63 : vector<2x128xf32>
    %c1_i32_55 = arith.constant 1 : i32
    %c0_i32_56 = arith.constant 0 : i32
    %c0_i32_57 = arith.constant 0 : i32
    %c0_i32_58 = arith.constant 0 : i32
    %65 = tpu.memref_slice %arg4[%c1_i32_55, %c0_i32_56, %c0_i32_57, %c0_i32_58] : memref<2x4x2x128xf32, #tpu.memory_space<vmem>> -> memref<1x4x2x128xf32, #tpu.memory_space<vmem>>
    %66 = tpu.memref_squeeze %65 : memref<1x4x2x128xf32, #tpu.memory_space<vmem>> -> memref<4x2x128xf32, #tpu.memory_space<vmem>>
    %c3_59 = arith.constant 3 : index
    %c0_60 = arith.constant 0 : index
    %c0_61 = arith.constant 0 : index
    %67 = vector.load %66[%c3_59, %c0_60, %c0_61] : memref<4x2x128xf32, #tpu.memory_space<vmem>>, vector<1x2x128xf32>
    %68 = vector.shape_cast %67 : vector<1x2x128xf32> to vector<2x128xf32>
    %c3_62 = arith.constant 3 : index
    %69 = memref.load %arg2[%c3_62] : memref<4xf32, #tpu.memory_space<smem>>
    %70 = vector.broadcast %69 : f32 to vector<2x128xf32>
    %71 = arith.mulf %68, %70 : vector<2x128xf32>
    %72 = arith.addf %64, %71 : vector<2x128xf32>
    %c0_63 = arith.constant 0 : index
    %73 = memref.load %arg3[%c0_63] : memref<1xf32, #tpu.memory_space<smem>>
    %74 = vector.broadcast %73 : f32 to vector<2x128xf32>
    %75 = arith.addf %72, %74 : vector<2x128xf32>
    %76 = arith.negf %75 : vector<2x128xf32>
    %77 = math.exp %76 : vector<2x128xf32>
    %cst_64 = arith.constant 1.000000e+00 : f32
    %78 = vector.broadcast %cst_64 : f32 to vector<2x128xf32>
    %79 = arith.addf %78, %77 : vector<2x128xf32>
    %80 = arith.divf %78, %79 : vector<2x128xf32>
    %c1_65 = arith.constant 1 : index
    %c0_66 = arith.constant 0 : index
    %c0_67 = arith.constant 0 : index
    %c0_68 = arith.constant 0 : index
    %81 = vector.load %arg5[%c1_65, %c0_66, %c0_67, %c0_68] : memref<2x1x2x128xf32, #tpu.memory_space<vmem>>, vector<1x1x2x128xf32>
    %82 = vector.shape_cast %81 : vector<1x1x2x128xf32> to vector<2x128xf32>
    %83 = vector.shape_cast %80 : vector<2x128xf32> to vector<1x1x2x128xf32>
    tpu.vector_store %arg5[%c1_65, %c0_66, %c0_67, %c0_68], %83 {strides = array<i32>} : memref<2x1x2x128xf32, #tpu.memory_space<vmem>>, vector<1x1x2x128xf32>,
    return
  }
  func.func @transform_0(%arg0: i32, %arg1: i32) -> i32 {
    %c0_i32 = arith.constant 0 : i32
    %c0_i32_0 = arith.constant 0 : i32
    return %c0_i32 : i32
  }
  func.func @transform_1(%arg0: i32, %arg1: i32) -> i32 {
    %c0_i32 = arith.constant 0 : i32
    %c0_i32_0 = arith.constant 0 : i32
    return %c0_i32 : i32
  }
  func.func @transform_2(%arg0: i32, %arg1: i32) -> (i32, i32, i32, i32) {
    %c0_i32 = arith.constant 0 : i32
    %c0_i32_0 = arith.constant 0 : i32
    %c0_i32_1 = arith.constant 0 : i32
    return %arg0, %c0_i32, %arg1, %c0_i32_0 : i32, i32, i32, i32
  }
  func.func @transform_3(%arg0: i32, %arg1: i32) -> (i32, i32, i32, i32) {
    %c0_i32 = arith.constant 0 : i32
    %c0_i32_0 = arith.constant 0 : i32
    %c0_i32_1 = arith.constant 0 : i32
    return %arg0, %c0_i32, %arg1, %c0_i32_0 : i32, i32, i32, i32
  }
}

</mosaic_0001>

<llo_original>
// kernel: ph_block_forward.1
$region0: #{ph_block_forward.1}
  #allocation0 [shape = 'u32[]', space=smem, size = 0x4, offset = 0x4, fixed_abs, tag = 'smem constant byte address 0x4 - core index']
  #allocation1 [shape = 'u32[144,128]{1,0:T(1,128)}', space=vmem, size = 0x12000, scoped, tag = 'internal scratch']
  #allocation2 [shape = 'f32[1]{0:T(128)S(6)}', space=smem, size = 0x200, scoped, tag = 'scoped memory for ph_block_forward.1']
  %s0 = inlined_call_operand.vmem [shape: f32[4], index: 0, kind: input, shape index: {}]
  %s1 = inlined_call_operand.<no memory space> [shape: f32[1], index: 1, kind: input, shape index: {}]
  %s2 = inlined_call_operand.vmem [shape: f32[2,4,2,128], index: 2, kind: input, shape index: {}]
  %s3 = inlined_call_operand.vmem [shape: f32[2,1,2,128], index: 3, kind: output, shape index: {}]
  %s4 = sld [smem:[#allocation0]]
  $region26: #{ph_block_forward.1} parent=0
    _
  %s6 = ssub.s32 1, %s4
  %s7 = scalar_select 0, %s6, %s4
  %8 = sst [smem:[#allocation2]] %s1
  $region1: #{ph_block_forward.1} parent=0
    #allocation3 [shape = 'u8[512]{0}', space=smem, size = 0x200, scoped, tag = 'input window, operand 0, single buffered']
    #allocation4 [shape = 's32[1]{0}', space=sflag, size = 0x4, scoped, tag = 'scoped memory for ph_block_forward.1']
    %9 = vsyncpa [#allocation4], 0
    // Predicated region
    $region2: #{ph_block_forward.1} parent=1 // pred_check
      _
    $region3: #{ph_block_forward.1} parent=1 // pred_check_branch
      %11 = sbr.rel (0) target = $region5
    $region4: #{ph_block_forward.1} parent=1 // pred_region
      %s13 = ssub.s32 16, 16
      %14 = vsyncadd [#allocation4], %s13
      %s16 = sshll.u32 %s0, 4
      %s17 = int_to_ptr.vmem [resolvable:$true] %s16
      %19 = dma.vmem_to_smem %s17, 16, [#allocation3], [#allocation4]
    $region5: #{ph_block_forward.1} parent=1 // pred_fallthru
      _
    // Predicated region
    $region6: #{ph_block_forward.1} parent=1 // pred_check
      _
    $region7: #{ph_block_forward.1} parent=1 // pred_check_branch
      %21 = sbr.rel (0) target = $region9
    $region8: #{ph_block_forward.1} parent=1 // pred_region
      _
    $region9: #{ph_block_forward.1} parent=1 // pred_fallthru
      _
    // Predicated region
    $region10: #{ph_block_forward.1} parent=1 // pred_check
      _
    $region11: #{ph_block_forward.1} parent=1 // pred_check_branch
      %23 = sbr.rel (0) target = $region13
    $region12: #{ph_block_forward.1} parent=1 // pred_region
      _
    $region13: #{ph_block_forward.1} parent=1 // pred_fallthru
      _
    // Predicated region
    $region14: #{ph_block_forward.1} parent=1 // pred_check
      _
    $region15: #{ph_block_forward.1} parent=1 // pred_check_branch
      %25 = sbr.rel (0) target = $region17
    $region16: #{ph_block_forward.1} parent=1 // pred_region
      %26 = dma.done [#allocation4], 16
    $region17: #{ph_block_forward.1} parent=1 // pred_fallthru
      _
    %27 = sfence
    %v28 = vld [vmem:[%s2] sm:$0x3]
    %s29 = sld [smem:[#allocation3]]
    %v30 = vstv %s29
    %v31 = vmul.f32 %v28, %v30
    %s32 = scalar_lea.vmem %s2, 2
    %v33 = vld [vmem:[%s32] sm:$0x3]
    %s34 = sld [smem:[#allocation3 + $0x1]]
    %v35 = vstv %s34
    %v36 = vmul.f32 %v33, %v35
    %v37 = vadd.f32 %v31, %v36
    %s38 = scalar_lea.vmem %s2, 4
    %v39 = vld [vmem:[%s38] sm:$0x3]
    %s40 = sld [smem:[#allocation3 + $0x2]]
    %v41 = vstv %s40
    %v42 = vmul.f32 %v39, %v41
    %v43 = vadd.f32 %v37, %v42
    %s44 = scalar_lea.vmem %s2, 6
    %v45 = vld [vmem:[%s44] sm:$0x3]
    %s46 = sld [smem:[#allocation3 + $0x3]]
    %v47 = vstv %s46
    %v48 = vmul.f32 %v45, %v47
    %v49 = vadd.f32 %v43, %v48
    %s50 = sld [smem:[#allocation2]]
    %v51 = vstv %s50
    %v52 = vadd.f32 %v49, %v51
    %v53 = vxor.u32 %v52, 2147483648
    %v54 = vmul.f32 %v53, 1.442695
    %v55 = vpow.pop %v54
    %v56 = vadd.f32 %v55, 1.0
    %v57 = vrcp.pop %v56
    %v58 = vmul.f32 1.0, %v57
    %59 = vst [vmem:[%s3] sm:$0x3] %v58
    %s60 = scalar_lea.vmem %s2, 8
    %v61 = vld [vmem:[%s60] sm:$0x3]
    %s62 = sld [smem:[#allocation3]]
    %v63 = vstv %s62
    %v64 = vmul.f32 %v61, %v63
    %s65 = scalar_lea.vmem %s60, 2
    %v66 = vld [vmem:[%s65] sm:$0x3]
    %s67 = sld [smem:[#allocation3 + $0x1]]
    %v68 = vstv %s67
    %v69 = vmul.f32 %v66, %v68
    %v70 = vadd.f32 %v64, %v69
    %s71 = scalar_lea.vmem %s60, 4
    %v72 = vld [vmem:[%s71] sm:$0x3]
    %s73 = sld [smem:[#allocation3 + $0x2]]
    %v74 = vstv %s73
    %v75 = vmul.f32 %v72, %v74
    %v76 = vadd.f32 %v70, %v75
    %s77 = scalar_lea.vmem %s60, 6
    %v78 = vld [vmem:[%s77] sm:$0x3]
    %s79 = sld [smem:[#allocation3 + $0x3]]
    %v80 = vstv %s79
    %v81 = vmul.f32 %v78, %v80
    %v82 = vadd.f32 %v76, %v81
    %s83 = sld [smem:[#allocation2]]
    %v84 = vstv %s83
    %v85 = vadd.f32 %v82, %v84
    %v86 = vxor.u32 %v85, 2147483648
    %v87 = vmul.f32 %v86, 1.442695
    %v88 = vpow.pop %v87
    %v89 = vadd.f32 %v88, 1.0
    %v90 = vrcp.pop %v89
    %v91 = vmul.f32 1.0, %v90
    %s92 = scalar_lea.vmem %s3, 2
    %93 = vst [vmem:[%s92] sm:$0x3] %v91
    // Predicated region
    $region18: #{ph_block_forward.1} parent=1 // pred_check
      _
    $region19: #{ph_block_forward.1} parent=1 // pred_check_branch
      %95 = sbr.rel (0) target = $region21
    $region20: #{ph_block_forward.1} parent=1 // pred_region
      _
    $region21: #{ph_block_forward.1} parent=1 // pred_fallthru
      _
    // Predicated region
    $region22: #{ph_block_forward.1} parent=1 // pred_check
      _
    $region23: #{ph_block_forward.1} parent=1 // pred_check_branch
      %97 = sbr.rel (0) target = $region25
    $region24: #{ph_block_forward.1} parent=1 // pred_region
      _
    $region25: #{ph_block_forward.1} parent=1 // pred_fallthru
      _
    %98 = vsyncpa [#allocation4], 1

</llo_original>
